<compile_context>
chip_gen: v7x
topology: tpu7x:2x2x1
jax: 0.10.0
libtpu: 0.0.40
codegen_flags: <defaults>
</compile_context>

<pallas_src>
import functools
import math

import jax
import jax.numpy as jnp
from jax.experimental import pallas as pl
from jax.experimental.pallas import tpu as pltpu


def _round_up(x: int, m: int) -> int:
    return ((x + m - 1) // m) * m


def token_embedding_kernel(tok_ref, emb_ref, out_ref, *,
                           scale: float, fold_scale: bool):
    # tok_ref: (TB, 1) int32 token ids for this block.
    # emb_ref: (V, D)  embedding table, VMEM-resident across the whole grid.
    # out_ref: (TB, D) output block (lane-dense when D % 128 == 0).
    tb = tok_ref.shape[0]
    v = emb_ref.shape[0]

    tok = tok_ref[...]                                        # (TB, 1) int32
    col = jax.lax.broadcasted_iota(jnp.int32, (tb, v), 1)     # (TB, V)
    hit = col == tok                                          # (TB, V) bool

    if fold_scale:
        # Fold sqrt(emb_size) into the selector: the MXU emits already-scaled
        # rows; saves the TB*D epilogue multiply. Exact for f32 tables.
        sel = jnp.where(hit,
                        jnp.asarray(scale, emb_ref.dtype),
                        jnp.asarray(0, emb_ref.dtype))        # (TB, V)
        gathered = jnp.dot(sel, emb_ref[...],
                           preferred_element_type=jnp.float32)  # (TB, D) f32
        out_ref[...] = gathered.astype(out_ref.dtype)
    else:
        # Low-precision table: keep the selector at 1.0 and scale the f32
        # accumulator (keeps the scale at full precision).
        sel = hit.astype(emb_ref.dtype)                       # (TB, V)
        gathered = jnp.dot(sel, emb_ref[...],
                           preferred_element_type=jnp.float32)  # (TB, D) f32
        out_ref[...] = (gathered * scale).astype(out_ref.dtype)


def token_embedding_forward(tokens: jnp.ndarray,
                            emb_table: jnp.ndarray,
                            *, block_tokens: int = 256) -> jnp.ndarray:
    """tokens: integer array of any shape; emb_table: [vocab_size, emb_size].

    Returns embedding_table[tokens] * sqrt(emb_size), shape tokens.shape + (D,).
    """
    orig_shape = tokens.shape
    V, D = emb_table.shape
    scale = math.sqrt(float(D))
    fold_scale = emb_table.dtype == jnp.float32

    tok_flat = tokens.reshape(-1).astype(jnp.int32)           # == tokens.long()
    n = tok_flat.shape[0]

    # Tokens per grid step: multiple of 8 (sublane tiling), capped by N.
    tb = min(_round_up(block_tokens, 8), _round_up(n, 8))
    n_pad = _round_up(n, tb)
    if n_pad != n:
        tok_flat = jnp.pad(tok_flat, (0, n_pad - n))          # pad with id 0
    tok2d = tok_flat.reshape(n_pad, 1)

    grid = (pl.cdiv(n_pad, tb),)

    # Scoped-VMEM budget: resident table (assume double-buffered to be safe)
    # + double-buffered id / output blocks + headroom.  Clamp to sane bounds.
    eb = emb_table.dtype.itemsize
    ob = eb  # output dtype == table dtype
    needed = (V * D * eb) * 2 + (tb * D * ob) * 2 + (tb * 4) * 2 + (2 << 20)
    vmem_limit = int(min(max(needed, 16 << 20), 64 << 20))

    out_flat = pl.pallas_call(
        functools.partial(token_embedding_kernel,
                          scale=scale, fold_scale=fold_scale),
        out_shape=jax.ShapeDtypeStruct((n_pad, D), emb_table.dtype),
        grid=grid,
        in_specs=[
            # per-block token ids (tiny, double-buffered by the pipeline)
            pl.BlockSpec((tb, 1), lambda i: (i, 0)),
            # full table, constant index_map -> DMA'd once, stays VMEM-resident
            pl.BlockSpec((V, D), lambda i: (0, 0)),
        ],
        out_specs=pl.BlockSpec((tb, D), lambda i: (i, 0)),
        compiler_params=pltpu.CompilerParams(
            # each token block is independent -> 'parallel' (megacore on v7x)
            dimension_semantics=("parallel",),
            vmem_limit_bytes=vmem_limit,
        ),
    )(tok2d, emb_table)

    return out_flat[:n].reshape(*orig_shape, D)


if __name__ == "__main__":
    # Small, module-consistent shapes: tokens [seq=8, batch=2], vocab 256, D 128.
    vocab_size, emb_size = 256, 128
    seq_len, batch = 8, 2

    key = jax.random.PRNGKey(0)
    k_emb, k_tok = jax.random.split(key)
    # nn.Embedding default init ~ N(0, 1)
    emb_table = jax.random.normal(k_emb, (vocab_size, emb_size), dtype=jnp.float32)
    tokens = jax.random.randint(k_tok, (seq_len, batch), 0, vocab_size,
                                dtype=jnp.int32)

    # block_tokens=8 -> grid=(2,) on this tiny example, exercising the pipeline.
    out = token_embedding_forward(tokens, emb_table, block_tokens=8)
    out = jax.block_until_ready(out)

    # Pure-JAX reference (same semantics as the PyTorch forward).
    ref = emb_table[tokens] * math.sqrt(emb_size)
    assert out.shape == (seq_len, batch, emb_size)
    assert jnp.allclose(out, ref, atol=1e-5, rtol=1e-5), "mismatch vs reference"

    print("KERNEL_OK")
</pallas_src>

<mosaic_0001>
module attributes {stable_mosaic.version = 11 : i64} {
  func.func @token_embedding_kernel(%arg0: i32, %arg1: memref<8x1xi32, #tpu.memory_space<vmem>>, %arg2: memref<256x128xf32, #tpu.memory_space<vmem>>, %arg3: memref<8x128xf32, #tpu.memory_space<vmem>>) attributes {dimension_semantics = [#tpu.dimension_semantics<parallel>], iteration_bounds = array<i64: 2>, scalar_prefetch = 0 : i64, scratch_operands = 0 : i64, tpu.core_type = #tpu.core_type<tc>, window_params = [{transform_indices = @transform_0, window_bounds = array<i64: 8, 1>}, {pipeline_mode = #tpu.pipeline_mode<synchronous>, transform_indices = @transform_1, window_bounds = array<i64: 256, 128>}, {transform_indices = @transform_2, window_bounds = array<i64: 8, 128>}]} {
    %c0 = arith.constant 0 : index
    %c0_0 = arith.constant 0 : index
    %0 = vector.load %arg1[%c0, %c0_0] : memref<8x1xi32, #tpu.memory_space<vmem>>, vector<8x1xi32>
    %1 = tpu.iota {dimensions = array<i32: 1>} : vector<8x256xi32>
    %2 = vector.broadcast %0 : vector<8x1xi32> to vector<8x256xi32>
    %3 = arith.cmpi eq, %1, %2 : vector<8x256xi32>
    %cst = arith.constant 11.3137083 : f32
    %cst_1 = arith.constant 0.000000e+00 : f32
    %4 = vector.broadcast %cst : f32 to vector<8x256xf32>
    %5 = vector.broadcast %cst_1 : f32 to vector<8x256xf32>
    %6 = arith.select %3, %4, %5 : vector<8x256xi1>, vector<8x256xf32>
    %c0_2 = arith.constant 0 : index
    %c0_3 = arith.constant 0 : index
    %7 = vector.load %arg2[%c0_2, %c0_3] : memref<256x128xf32, #tpu.memory_space<vmem>>, vector<256x128xf32>
    %cst_4 = arith.constant dense<0.000000e+00> : vector<8x128xf32>
    %8 = tpu.matmul %6, %7, %cst_4 {dimension_numbers = #tpu.dot_dimension_numbers<[1], [0], [0], [1], [0, 0, 1, 1], [], []>} : vector<8x256xf32>, vector<256x128xf32>, vector<8x128xf32> -> vector<8x128xf32>
    %c0_5 = arith.constant 0 : index
    %c0_6 = arith.constant 0 : index
    %9 = vector.load %arg3[%c0_5, %c0_6] : memref<8x128xf32, #tpu.memory_space<vmem>>, vector<8x128xf32>
    tpu.vector_store %arg3[%c0_5, %c0_6], %8 {strides = array<i32>} : memref<8x128xf32, #tpu.memory_space<vmem>>, vector<8x128xf32>,
    return
  }
  func.func @transform_0(%arg0: i32) -> (i32, i32) {
    %c0_i32 = arith.constant 0 : i32
    %c0_i32_0 = arith.constant 0 : i32
    return %arg0, %c0_i32 : i32, i32
  }
  func.func @transform_1(%arg0: i32) -> (i32, i32) {
    %c0_i32 = arith.constant 0 : i32
    %c0_i32_0 = arith.constant 0 : i32
    %c0_i32_1 = arith.constant 0 : i32
    return %c0_i32, %c0_i32_0 : i32, i32
  }
  func.func @transform_2(%arg0: i32) -> (i32, i32) {
    %c0_i32 = arith.constant 0 : i32
    %c0_i32_0 = arith.constant 0 : i32
    return %arg0, %c0_i32 : i32, i32
  }
}

</mosaic_0001>

<llo_original>
// kernel: tpu_custom_call.1
$region0: #{tpu_custom_call.1}
  #allocation0 [shape = 'u32[]', space=smem, size = 0x4, offset = 0x4, fixed_abs, tag = 'smem constant byte address 0x4 - core index']
  #allocation1 [shape = 'u32[144,128]{1,0:T(1,128)}', space=vmem, size = 0x12000, scoped, tag = 'internal scratch']
  %s0 = inlined_call_operand.vmem [shape: s32[16,1], index: 0, kind: input, shape index: {}]
  %s1 = inlined_call_operand.hbm [shape: f32[256,128], index: 1, kind: input, shape index: {}]
  %s2 = inlined_call_operand.hbm [shape: f32[16,128], index: 2, kind: output, shape index: {}]
  %s3 = sld [smem:[#allocation0]]
  $region45: #{tpu_custom_call.1} parent=0
    _
  %s5 = ssub.s32 1, %s3
  %s6 = scalar_select 0, %s5, %s3
  $region1: #{tpu_custom_call.1} parent=0
    #allocation2 [shape = 'u8[131072]{0}', space=vmem, size = 0x20000, scoped, tag = 'input window, operand 1, single buffered']
    #allocation3 [shape = 's32[2]{0}', space=sflag, size = 0x8, scoped, tag = 'scoped memory for tpu_custom_call.1']
    #allocation4 [shape = 's32[2]{0}', space=sflag, size = 0x8, scoped, tag = 'scoped memory for tpu_custom_call.1']
    #allocation5 [shape = 'u8[8192]{0}', space=vmem, size = 0x2000, scoped, tag = 'output window, operand 0']
    %7 = vsyncpa [#allocation3], 0
    %8 = vsyncpa [#allocation4], 0
    %s9 = scalar_lea.sflag [#allocation4], 1
    %10 = vsyncpa %s9, 0
    loop: start=0, step=1, limit=4
    $region2: #{tpu_custom_call.1} parent=1 // loop_pre_header
      _
    $region3: #{tpu_custom_call.1} parent=1 // loop_header
      %s12 = sphi 0, %s16
      %p13 = scmp.ge.s32.totalorder %s12, 4
      %s22 = sphi 0, %s24
      %s25 = sphi 0, %s22
      %s26 = sphi 0, %s25
      %s42 = sphi 0, %s26
      %s46 = sphi 0, %s46
      %s48 = sphi 0, %s46
      %s49 = sphi 0, %s48
      %s63 = sphi 0, %s49
      %s69 = sphi 0, %s71
      %s72 = sphi 0, %s69
      %s73 = sphi 0, %s72
      %s89 = sphi 0, %s73
    $region4: #{tpu_custom_call.1} parent=1 // loop_header_branch
      %15 = sbr.rel (%p13) target = $region8
    $region5: #{tpu_custom_call.1} parent=1 // loop_body
      %s17 = ssub.s32 %s12, 1
      %s18 = ssub.s32 %s12, 2
      %s19 = sadd.s32 %s12, 1
      %s20 = ssub.s32 %s12, %s19
      %p21 = scmp.eq.s32.totalorder %s20, 0
      %s23 = sadd.s32 %s22, 1
      %s24 = scalar_select %p21, %s22, %s23
      %p27 = pneg %p21
      %p28 = scmp.eq.s32.totalorder %s12, 1
      %p29 = por %p27, %p28
      %p30 = scmp.ne.s32.totalorder %s22, %s25
      %p31 = scmp.eq.s32.totalorder %s12, 0
      %p32 = por %p30, %p31
      %p33 = scmp.ne.s32.totalorder %s22, %s25
      %p34 = scmp.eq.s32.totalorder %s17, 1
      %p35 = por %p33, %p34
      %p36 = scmp.ne.s32.totalorder %s25, %s26
      %p37 = scmp.eq.s32.totalorder %s17, 0
      %p38 = por %p36, %p37
      %p39 = scmp.ne.s32.totalorder %s25, %s26
      %p40 = scmp.eq.s32.totalorder %s18, 1
      %p41 = por %p39, %p40
      %p43 = scmp.ne.s32.totalorder %s26, %s42
      %p44 = scmp.eq.s32.totalorder %s18, 0
      %p45 = por %p43, %p44
      %s47 = sadd.s32 %s46, 1
      %p50 = scmp.eq.s32.totalorder %s12, 1
      %p51 = scmp.ne.s32.totalorder %s46, %s48
      %p52 = scmp.eq.s32.totalorder %s12, 0
      %p53 = por %p51, %p52
      %p54 = scmp.ne.s32.totalorder %s46, %s48
      %p55 = scmp.eq.s32.totalorder %s17, 1
      %p56 = por %p54, %p55
      %p57 = scmp.ne.s32.totalorder %s48, %s49
      %p58 = scmp.eq.s32.totalorder %s17, 0
      %p59 = por %p57, %p58
      %p60 = scmp.ne.s32.totalorder %s48, %s49
      %p61 = scmp.eq.s32.totalorder %s18, 1
      %p62 = por %p60, %p61
      %p64 = scmp.ne.s32.totalorder %s49, %s63
      %p65 = scmp.eq.s32.totalorder %s18, 0
      %p66 = por %p64, %p65
      %s67 = ssub.s32 %s12, %s19
      %p68 = scmp.eq.s32.totalorder %s67, 0
      %s70 = sadd.s32 %s69, 1
      %s71 = scalar_select %p68, %s69, %s70
      %p74 = pneg %p68
      %p75 = scmp.eq.s32.totalorder %s12, 1
      %p76 = por %p74, %p75
      %p77 = scmp.ne.s32.totalorder %s69, %s72
      %p78 = scmp.eq.s32.totalorder %s12, 0
      %p79 = por %p77, %p78
      %p80 = scmp.ne.s32.totalorder %s69, %s72
      %p81 = scmp.eq.s32.totalorder %s17, 1
      %p82 = por %p80, %p81
      %p83 = scmp.ne.s32.totalorder %s72, %s73
      %p84 = scmp.eq.s32.totalorder %s17, 0
      %p85 = por %p83, %p84
      %p86 = scmp.ne.s32.totalorder %s72, %s73
      %p87 = scmp.eq.s32.totalorder %s18, 1
      %p88 = por %p86, %p87
      %p90 = scmp.ne.s32.totalorder %s73, %s89
      %p91 = scmp.eq.s32.totalorder %s18, 0
      %p92 = por %p90, %p91
      %p93 = scmp.le.s32.totalorder 1, %s12
      %p94 = scmp.lt.s32.totalorder %s12, 3
      %p95 = pnand %p93, %p94
      %p96 = pneg %p95
      // Predicated region
      $region9: #{tpu_custom_call.1} parent=5 // pred_check
        _
      $region10: #{tpu_custom_call.1} parent=5 // pred_check_branch
        %98 = sbr.rel (%p95) target = $region12
      $region11: #{tpu_custom_call.1} parent=5 // pred_region
        %s99 = ssub.s32 %s12, 1
        // Predicated region
        $region13: #{tpu_custom_call.1} parent=11 // pred_check
          %p100 = pneg %p59
        $region14: #{tpu_custom_call.1} parent=11 // pred_check_branch
          %102 = sbr.rel (%p100) target = $region16
        $region15: #{tpu_custom_call.1} parent=11 // pred_region
          %s104 = ssub.s32 4096, 4096
          %105 = vsyncadd [#allocation3], %s104
          %s106 = sshll.u32 [#allocation2], 4
          %s107 = int_to_ptr.vmem [resolvable:$true] %s106
          %112 = dma.hbm_to_vmem [thread:$0]  %s1, 4096, %s107, [#allocation3], 128, 128, 8
        $region16: #{tpu_custom_call.1} parent=11 // pred_fallthru
          _
      $region12: #{tpu_custom_call.1} parent=5 // pred_fallthru
        _
      %p113 = scmp.lt.s32.totalorder %s12, 2
      // Predicated region
      $region17: #{tpu_custom_call.1} parent=5 // pred_check
        %p114 = pneg %p113
      $region18: #{tpu_custom_call.1} parent=5 // pred_check_branch
        %116 = sbr.rel (%p114) target = $region20
      $region19: #{tpu_custom_call.1} parent=5 // pred_region
        // Predicated region
        $region21: #{tpu_custom_call.1} parent=19 // pred_check
          %p117 = pneg %p32
        $region22: #{tpu_custom_call.1} parent=19 // pred_check_branch
          %119 = sbr.rel (%p117) target = $region24
        $region23: #{tpu_custom_call.1} parent=19 // pred_region
          %p120 = scmp.lt.s32.totalorder %s12, 1
          %s121 = scalar_select %p120, %s12, 1
          %s122 = smul.addr %s121, 8
          %s123 = scalar_lea.vmem %s0, %s122
        $region24: #{tpu_custom_call.1} parent=19 // pred_fallthru
          _
      $region20: #{tpu_custom_call.1} parent=5 // pred_fallthru
        _
      %p124 = scmp.le.s32.totalorder 1, %s12
      %p125 = scmp.lt.s32.totalorder %s12, 3
      %p126 = pnand %p124, %p125
      %p127 = pneg %p126
      // Predicated region
      $region25: #{tpu_custom_call.1} parent=5 // pred_check
        _
      $region26: #{tpu_custom_call.1} parent=5 // pred_check_branch
        %129 = sbr.rel (%p126) target = $region28
      $region27: #{tpu_custom_call.1} parent=5 // pred_region
        %s130 = ssub.s32 %s12, 1
        // Predicated region
        $region29: #{tpu_custom_call.1} parent=27 // pred_check
          %p131 = pneg %p59
        $region30: #{tpu_custom_call.1} parent=27 // pred_check_branch
          %133 = sbr.rel (%p131) target = $region32
        $region31: #{tpu_custom_call.1} parent=27 // pred_region
          %134 = dma.done [#allocation3], 4096
        $region32: #{tpu_custom_call.1} parent=27 // pred_fallthru
          _
        %p135 = scmp.lt.s32.totalorder %s17, 1
        %s136 = scalar_select %p135, %s17, 1
        %s137 = smul.addr %s136, 8
        %s138 = scalar_lea.vmem %s0, %s137
        %p139 = pneg %p38
        %p140 = pneg %p35
        %p141 = pneg %p59
        %p142 = pneg %p56
        %p143 = pneg %p85
        %p144 = pneg %p82
        %s145 = sand.u32 %s72, 1
        %s146 = scalar_lea.sflag [#allocation4], %s145
        %s147 = sand.u32 %s72, 1
        %s148 = smul.addr %s147, 8
        %s149 = scalar_lea.vmem [#allocation5], %s148
        %p150 = scmp.lt.s32.totalorder %s17, 1
        %s151 = scalar_select %p150, %s17, 1
        %s152 = smul.addr %s151, 8
        %s153 = scalar_lea.vmem %s0, %s152
        %v154 = vld [vmem:[%s153] sm:$0xff]
        %v155 = vlaneseq
        %v156 = vand.u32 %v155, 127
        %v157 = vadd.s32 %v156, 128
        %158 = vset.pattern.permute.xlu0 0
        %159 = vperm.xlu0 %158, %v154
        %v160 = vpop.permute.xlu0 %159
        %vm161 = vcmp.eq.s32.totalorder %v156, %v160
        %vm162 = vcmp.eq.s32.totalorder %v157, %v160
        %v163 = vsel %vm161, 11.313708, 0.0
        %v164 = vsel %vm162, 11.313708, 0.0
        %v165 = vld [vmem:[#allocation2] sm:$0xff]
        %v166 = vld [vmem:[#allocation2 + $0x8] sm:$0xff]
        %v167 = vld [vmem:[#allocation2 + $0x10] sm:$0xff]
        %v168 = vld [vmem:[#allocation2 + $0x18] sm:$0xff]
        %v169 = vld [vmem:[#allocation2 + $0x20] sm:$0xff]
        %v170 = vld [vmem:[#allocation2 + $0x28] sm:$0xff]
        %v171 = vld [vmem:[#allocation2 + $0x30] sm:$0xff]
        %v172 = vld [vmem:[#allocation2 + $0x38] sm:$0xff]
        %v173 = vld [vmem:[#allocation2 + $0x40] sm:$0xff]
        %v174 = vld [vmem:[#allocation2 + $0x48] sm:$0xff]
        %v175 = vld [vmem:[#allocation2 + $0x50] sm:$0xff]
        %v176 = vld [vmem:[#allocation2 + $0x58] sm:$0xff]
        %v177 = vld [vmem:[#allocation2 + $0x60] sm:$0xff]
        %v178 = vld [vmem:[#allocation2 + $0x68] sm:$0xff]
        %v179 = vld [vmem:[#allocation2 + $0x70] sm:$0xff]
        %v180 = vld [vmem:[#allocation2 + $0x78] sm:$0xff]
        %v181 = vld [vmem:[#allocation2 + $0x80] sm:$0xff]
        %v182 = vld [vmem:[#allocation2 + $0x88] sm:$0xff]
        %v183 = vld [vmem:[#allocation2 + $0x90] sm:$0xff]
        %v184 = vld [vmem:[#allocation2 + $0x98] sm:$0xff]
        %v185 = vld [vmem:[#allocation2 + $0xa0] sm:$0xff]
        %v186 = vld [vmem:[#allocation2 + $0xa8] sm:$0xff]
        %v187 = vld [vmem:[#allocation2 + $0xb0] sm:$0xff]
        %v188 = vld [vmem:[#allocation2 + $0xb8] sm:$0xff]
        %v189 = vld [vmem:[#allocation2 + $0xc0] sm:$0xff]
        %v190 = vld [vmem:[#allocation2 + $0xc8] sm:$0xff]
        %v191 = vld [vmem:[#allocation2 + $0xd0] sm:$0xff]
        %v192 = vld [vmem:[#allocation2 + $0xd8] sm:$0xff]
        %v193 = vld [vmem:[#allocation2 + $0xe0] sm:$0xff]
        %v194 = vld [vmem:[#allocation2 + $0xe8] sm:$0xff]
        %v195 = vld [vmem:[#allocation2 + $0xf0] sm:$0xff]
        %v196 = vld [vmem:[#allocation2 + $0xf8] sm:$0xff]
        %197 = vmatprep.subr.mxu0 0.0
        %198 = vmatpush1.msra.mxu0 %v165
        %199 = vmatprep.subr.mxu0 0.0
        %200 = vmatpush1.msra.mxu0 %v166
        %201 = vmatprep.subr.mxu0 0.0
        %202 = vmatpush1.msra.mxu0 %v167
        %203 = vmatprep.subr.mxu0 0.0
        %204 = vmatpush1.msra.mxu0 %v168
        %205 = vmatprep.subr.mxu0 0.0
        %206 = vmatpush1.msra.mxu0 %v169
        %207 = vmatprep.subr.mxu0 0.0
        %208 = vmatpush1.msra.mxu0 %v170
        %209 = vmatprep.subr.mxu0 0.0
        %210 = vmatpush1.msra.mxu0 %v171
        %211 = vmatprep.subr.mxu0 0.0
        %212 = vmatpush1.msra.mxu0 %v172
        %213 = vmatprep.subr.mxu0 0.0
        %214 = vmatpush1.msra.mxu0 %v173
        %215 = vmatprep.subr.mxu0 0.0
        %216 = vmatpush1.msra.mxu0 %v174
        %217 = vmatprep.subr.mxu0 0.0
        %218 = vmatpush1.msra.mxu0 %v175
        %219 = vmatprep.subr.mxu0 0.0
        %220 = vmatpush1.msra.mxu0 %v176
        %221 = vmatprep.subr.mxu0 0.0
        %222 = vmatpush1.msra.mxu0 %v177
        %223 = vmatprep.subr.mxu0 0.0
        %224 = vmatpush1.msra.mxu0 %v178
        %225 = vmatprep.subr.mxu0 0.0
        %226 = vmatpush1.msra.mxu0 %v179
        %227 = vmatprep.subr.mxu0 0.0
        %228 = vmatpush1.msra.mxu0 %v180
        %229 = vmatprep.subr.mxu0 0.0
        %230 = vmatpush1.msra.mxu0 %v181
        %231 = vmatprep.subr.mxu0 0.0
        %232 = vmatpush1.msra.mxu0 %v182
        %233 = vmatprep.subr.mxu0 0.0
        %234 = vmatpush1.msra.mxu0 %v183
        %235 = vmatprep.subr.mxu0 0.0
        %236 = vmatpush1.msra.mxu0 %v184
        %237 = vmatprep.subr.mxu0 0.0
        %238 = vmatpush1.msra.mxu0 %v185
        %239 = vmatprep.subr.mxu0 0.0
        %240 = vmatpush1.msra.mxu0 %v186
        %241 = vmatprep.subr.mxu0 0.0
        %242 = vmatpush1.msra.mxu0 %v187
        %243 = vmatprep.subr.mxu0 0.0
        %244 = vmatpush1.msra.mxu0 %v188
        %245 = vmatprep.subr.mxu0 0.0
        %246 = vmatpush1.msra.mxu0 %v189
        %247 = vmatprep.subr.mxu0 0.0
        %248 = vmatpush1.msra.mxu0 %v190
        %249 = vmatprep.subr.mxu0 0.0
        %250 = vmatpush1.msra.mxu0 %v191
        %251 = vmatprep.subr.mxu0 0.0
        %252 = vmatpush1.msra.mxu0 %v192
        %253 = vmatprep.subr.mxu0 0.0
        %254 = vmatpush1.msra.mxu0 %v193
        %255 = vmatprep.subr.mxu0 0.0
        %256 = vmatpush1.msra.mxu0 %v194
        %257 = vmatprep.subr.mxu0 0.0
        %258 = vmatpush1.msra.mxu0 %v195
        %259 = vmatprep.subr.mxu0 0.0
        %260 = vmatpush1.msra.mxu0 %v196
        %261 = vmatprep.mubr.f32.mxu0 %v164
        %262 = vmatmul.mubr.f32.gmra.mrb[0].mxu0 %v163
        %v263 = vpop.f32.mrb[0].mxu0
        %v264 = vadd.f32 0.0, %v263
        %v265 = vpop.f32.mrb[0].mxu0
        %266 = vdwg.mxu0
        %267 = vst [vmem:[%s149] sm:$0xff] %v264
        %s268 = sand.u32 %s72, 1
        %s269 = scalar_lea.sflag [#allocation4], %s268
        %s270 = sand.u32 %s72, 1
        %s271 = smul.addr %s270, 8
        %s272 = scalar_lea.vmem [#allocation5], %s271
        // Predicated region
        $region33: #{tpu_custom_call.1} parent=27 // pred_check
          %p273 = pneg %p82
        $region34: #{tpu_custom_call.1} parent=27 // pred_check_branch
          %275 = sbr.rel (%p273) target = $region36
        $region35: #{tpu_custom_call.1} parent=27 // pred_region
          %s277 = ssub.s32 128, 128
          %278 = vsyncadd %s269, %s277
          %s279 = smul.addr %s17, 128
          %s280 = scalar_lea.hbm %s2, %s279
          %s282 = sshll.u32 %s272, 4
          %s283 = int_to_ptr.vmem [resolvable:$true] %s282
          %285 = dma.vmem_to_hbm [thread:$0]  %s283, 128, %s280, %s269
        $region36: #{tpu_custom_call.1} parent=27 // pred_fallthru
          _
      $region28: #{tpu_custom_call.1} parent=5 // pred_fallthru
        _
      %p286 = scmp.le.s32.totalorder 2, %s12
      // Predicated region
      $region37: #{tpu_custom_call.1} parent=5 // pred_check
        %p287 = pneg %p286
      $region38: #{tpu_custom_call.1} parent=5 // pred_check_branch
        %289 = sbr.rel (%p287) target = $region40
      $region39: #{tpu_custom_call.1} parent=5 // pred_region
        %s290 = ssub.s32 %s12, 2
        // Predicated region
        $region41: #{tpu_custom_call.1} parent=39 // pred_check
          %p291 = pneg %p88
        $region42: #{tpu_custom_call.1} parent=39 // pred_check_branch
          %293 = sbr.rel (%p291) target = $region44
        $region43: #{tpu_custom_call.1} parent=39 // pred_region
          %s294 = sand.u32 %s73, 1
          %s295 = scalar_lea.sflag [#allocation4], %s294
          %s296 = sand.u32 %s73, 1
          %s297 = smul.addr %s296, 8
          %s298 = scalar_lea.vmem [#allocation5], %s297
          %299 = dma.done %s295, 128
        $region44: #{tpu_custom_call.1} parent=39 // pred_fallthru
          _
      $region40: #{tpu_custom_call.1} parent=5 // pred_fallthru
        _
    $region6: #{tpu_custom_call.1} parent=1 // loop_footer
      %s16 = sadd.s32 1, %s12
    $region7: #{tpu_custom_call.1} parent=1 // loop_footer_branch
      %11 = sbr.rel target = $region3
    $region8: #{tpu_custom_call.1} parent=1 // loop_exit
      _
    %300 = vsyncpa [#allocation3], 1
    %s301 = scalar_lea.sflag [#allocation3], 1
    %302 = vsyncpa %s301, 1
    %303 = vsyncpa [#allocation4], 1
    %s304 = scalar_lea.sflag [#allocation4], 1
    %305 = vsyncpa %s304, 1

</llo_original>
